<compile_context>
chip_gen: v7x
topology: tpu7x:2x2x1
jax: 0.10.0
libtpu: 0.0.40
codegen_flags: <defaults>
</compile_context>

<pallas_src>
import functools

import jax
import jax.numpy as jnp
from jax import lax
from jax.experimental import pallas as pl
from jax.experimental.pallas import tpu as pltpu


_SINGLE_BUFFER_MIN_BYTES = 1 << 20        # single-buffer invariant operands >= 1 MiB
_DENSE_KRON_MAX_BYTES = 4 * 1024 * 1024   # keep resident kron(A, I_L) modest


def _round_up(x, m):
    return ((x + m - 1) // m) * m


def _chip_params():
    """Per-generation (vmem_limit_bytes, block_target_bytes, dense_ai_max).

    dense_ai_max = max f32 arithmetic intensity (FLOP/byte) at which the kron
    formulation stays HBM-bound: v5e ridge ~60 (cap VL=WL~256 -> AI 64),
    v7x ridge ~78 (cap ~384 -> AI 96), v6e ridge ~165.
    """
    try:
        kind = jax.devices()[0].device_kind.lower()
    except Exception:
        kind = ""
    try:
        vmem_cap = pltpu.get_tpu_info().vmem_capacity_bytes
    except Exception:
        vmem_cap = 64 * 1024 * 1024       # conservative: assume v7x-sized VMEM
    if vmem_cap >= 128 * 1024 * 1024:     # v5e / v6e: 128 MiB physical VMEM
        vmem_limit = 64 * 1024 * 1024
        block_target = 8 * 1024 * 1024
    else:                                 # v7x: 64 MiB physical VMEM
        vmem_limit = 32 * 1024 * 1024
        block_target = 4 * 1024 * 1024
    if "v6" in kind or "6e" in kind:
        dense_ai_max = 165.0
    elif "v7" in kind or "7x" in kind:
        dense_ai_max = 96.0
    else:                                 # v5e or unknown: most conservative ridge
        dense_ai_max = 64.0
    return vmem_limit, block_target, dense_ai_max


def _pick_rows(batch, row_bytes, resident_vmem_bytes, vmem_limit, block_target,
               granularity):
    """Rows (N*C slabs) per grid step, with honest VMEM accounting.

    Constraint: 2*(x_block + out_block) + resident operand <= ~75% of the
    scoped VMEM limit (double-buffered blocks + Mosaic scratch headroom).
    Target: x_block + out_block ~ block_target to amortize the ~0.35us/step
    overhead.  Prefer >= 2 grid steps when the problem is > ~1 MiB so v7x's
    two TensorCores both get work on the 'parallel' axis.
    """
    row_bytes = max(int(row_bytes), 1)
    budget = int(vmem_limit * 0.75) - int(resident_vmem_bytes)
    cap = max(granularity, budget // (2 * row_bytes))
    target = max(granularity, block_target // row_bytes)
    rows = min(cap, target)
    if batch * row_bytes > (1 << 20):          # big enough to be worth splitting
        rows = min(rows, _round_up(pl.cdiv(batch, 2), granularity))
    rows = max(granularity, (rows // granularity) * granularity)
    if batch >= granularity:
        rows = min(rows, (batch // granularity) * granularity)
    else:
        rows = batch
    return int(max(1, rows))


def _resident_spec(shape, padded_bytes):
    """BlockSpec for a grid-invariant operand.

    Large operands are single-buffered (pl.Buffered(1)) so the pipeline does
    not allocate a useless second copy (on v7x 2x|A^T| can eat the whole
    scoped limit); tiny ones keep the default double buffer (free).
    Returns (spec, vmem_bytes_consumed) for the block-sizing budget.
    """
    ndim = len(shape)
    if padded_bytes >= _SINGLE_BUFFER_MIN_BYTES:
        spec = pl.BlockSpec(shape, lambda i: (0,) * ndim,
                            pipeline_mode=pl.Buffered(1))
        return spec, padded_bytes
    return pl.BlockSpec(shape, lambda i: (0,) * ndim), 2 * padded_bytes


# ---------------------------------------------------------------------------
# Path 1: lane-dense single-matmul path (HBM-bound by the roofline gate).
#   out2(B, W*L) = x2(B, V*L) @ kron(A, I_L)
# Both blocks are dense 2-D slabs, so loads/stores are unmasked and there is
# zero relayout / transpose work in the kernel.
# ---------------------------------------------------------------------------
def _nconv_dense_kernel(x_ref, ak_ref, o_ref):
    # x_ref: (TB, V*L)   ak_ref: (V*L, W*L) grid-invariant   o_ref: (TB, W*L)
    # Default dot precision matches the f32 einsum reference within 1e-4;
    # pass precision=lax.Precision.HIGHEST for stricter PyTorch-f32 parity.
    o_ref[...] = jnp.dot(
        x_ref[...], ak_ref[...], preferred_element_type=jnp.float32
    ).astype(o_ref.dtype)


def _nconv_dense(x_flat, A, B, V, L, W, vmem_limit, block_target):
    VL, WL = V * L, W * L
    a_kron = jnp.kron(A, jnp.eye(L, dtype=A.dtype))        # (V*L, W*L), built once
    x2 = x_flat.reshape(B, VL)                              # free: (V, L) contiguous

    kron_bytes = _round_up(VL, 8) * _round_up(WL, 128) * 4
    ak_spec, resident_vmem = _resident_spec((VL, WL), kron_bytes)

    if B <= 8:
        # 2-D block: the batch dim sits on sublanes, so a block must be a
        # multiple of 8 rows or the full dim -- for B <= 8 there is no legal split.
        tb = B
    else:
        row_bytes = (_round_up(VL, 128) + _round_up(WL, 128)) * 4
        tb = _pick_rows(B, row_bytes, resident_vmem, vmem_limit, block_target,
                        granularity=8)
    grid = (pl.cdiv(B, tb),)

    cost = pl.CostEstimate(
        flops=2 * B * V * W * L,                 # exact op FLOPs, not kron-inflated
        transcendentals=0,
        bytes_accessed=4 * (B * VL + B * WL + V * W),
    )
    out2 = pl.pallas_call(
        _nconv_dense_kernel,
        out_shape=jax.ShapeDtypeStruct((B, WL), x_flat.dtype),
        grid_spec=pltpu.PrefetchScalarGridSpec(
            num_scalar_prefetch=0,
            grid=grid,
            in_specs=[
                pl.BlockSpec((tb, VL), lambda i: (i, 0)),   # batched x block
                ak_spec,                                    # kron(A, I_L) resident
            ],
            out_specs=pl.BlockSpec((tb, WL), lambda i: (i, 0)),
        ),
        compiler_params=pltpu.CompilerParams(
            dimension_semantics=("parallel",),
            vmem_limit_bytes=vmem_limit,
        ),
        cost_estimate=cost,
    )(x2, a_kron)
    return out2.reshape(B, W, L)


# ---------------------------------------------------------------------------
# Path 2: general fallback (large V*L / W*L).  Exact FLOPs: one (W,V)@(V,L)
# MXU matmul per slab, TB slabs batched per grid step, A pre-transposed once.
# ---------------------------------------------------------------------------
def _nconv_loop_kernel(tb, b_total, guard_tail, unroll, at_ref, x_ref, o_ref):
    # at_ref: (W, V) grid-invariant; x_ref: (TB, V, L); o_ref: (TB, W, L)
    at = at_ref[...]                           # hoisted out of the slab loop
    base = pl.program_id(0) * tb if guard_tail else None

    def body(b, carry):
        def compute():
            o_ref[b] = jnp.dot(
                at, x_ref[b], preferred_element_type=jnp.float32
            ).astype(o_ref.dtype)
        if guard_tail:
            # Skip padded slabs of the ragged last block (up to tb-1 matmuls saved).
            pl.when(base + b < b_total)(compute)
        else:
            compute()
        return carry

    lax.fori_loop(0, tb, body, 0, unroll=unroll)


def _nconv_loop(x_flat, A, B, V, L, W, vmem_limit, block_target):
    a_t = A.T                                  # one transpose, in the wrapper

    lane = _round_up(L, 128)
    x_row = _round_up(V, 8) * lane * 4          # padded VMEM bytes per (V, L) slab
    o_row = _round_up(W, 8) * lane * 4
    at_bytes = _round_up(W, 8) * _round_up(V, 128) * 4
    at_spec, resident_vmem = _resident_spec((W, V), at_bytes)

    # Leading batch dim of a 3-D block has no sublane constraint -> granularity 1,
    # so even small B can be split across v7x's two cores when slabs are large.
    tb = _pick_rows(B, x_row + o_row, resident_vmem, vmem_limit, block_target,
                    granularity=1)
    tb = min(tb, B)
    grid = (pl.cdiv(B, tb),)
    guard_tail = (B % tb) != 0

    # Cap unroll: never fully unroll; keep unrolled live (W, L) f32 result tiles
    # under ~16 vregs so we stay inside the 64-vreg file.
    res_vregs = pl.cdiv(W, 8) * pl.cdiv(L, 128)
    unroll = int(max(1, min(8, tb, 16 // max(res_vregs, 1))))

    cost = pl.CostEstimate(
        flops=2 * B * V * W * L,
        transcendentals=0,
        bytes_accessed=4 * (B * V * L + B * W * L + V * W),
    )
    out = pl.pallas_call(
        functools.partial(_nconv_loop_kernel, tb, B, guard_tail, unroll),
        out_shape=jax.ShapeDtypeStruct((B, W, L), x_flat.dtype),
        grid_spec=pltpu.PrefetchScalarGridSpec(
            num_scalar_prefetch=0,
            grid=grid,
            in_specs=[
                at_spec,                                       # A^T resident
                pl.BlockSpec((tb, V, L), lambda i: (i, 0, 0)),  # batched x block
            ],
            out_specs=pl.BlockSpec((tb, W, L), lambda i: (i, 0, 0)),
        ),
        compiler_params=pltpu.CompilerParams(
            dimension_semantics=("parallel",),
            vmem_limit_bytes=vmem_limit,
        ),
        cost_estimate=cost,
    )(a_t, x_flat)
    return out


def nconv(x, A):
    """x: (N, C, V, L), A: (V, W) -> (N, C, W, L) == einsum('ncvl,vw->ncwl')."""
    N, C, V, L = x.shape
    Va, W = A.shape
    assert Va == V, "A's first dim must match x's node dim"

    B = N * C
    x_flat = x.reshape(B, V, L)
    vmem_limit, block_target, dense_ai_max = _chip_params()

    VL, WL = V * L, W * L
    kron_bytes = _round_up(VL, 8) * _round_up(WL, 128) * 4
    # Roofline gate: the kron path inflates FLOPs by L, so only take it while
    # its f32 arithmetic intensity stays below the chip's MXU/HBM ridge AND
    # kron(A, I_L) stays small enough to live in VMEM.  (An odd W*L would get
    # one masked tail vreg on store -- accepted knowingly.)
    ai = (VL * WL) / (2.0 * (VL + WL))
    if ai <= dense_ai_max and kron_bytes <= _DENSE_KRON_MAX_BYTES:
        out = _nconv_dense(x_flat, A, B, V, L, W, vmem_limit, block_target)
    else:
        out = _nconv_loop(x_flat, A, B, V, L, W, vmem_limit, block_target)
    return out.reshape(N, C, W, L)   # kernel output is already contiguous


if __name__ == "__main__":
    key = jax.random.PRNGKey(0)
    kx, ka = jax.random.split(key)

    # Small shapes consistent with the module: batch=2, channels=4,
    # num_nodes V=W=16, seq length L=16.
    N, C, V, L = 2, 4, 16, 16
    W = V

    x = jax.random.normal(kx, (N, C, V, L), dtype=jnp.float32)
    A = jax.random.normal(ka, (V, W), dtype=jnp.float32)

    ref = jnp.einsum('ncvl,vw->ncwl', x, A)

    # Main entry (takes the lane-dense kron path at this size on all chips).
    out = nconv(x, A)
    out = jax.block_until_ready(out)
    assert out.shape == (N, C, W, L)
    assert jnp.allclose(out, ref, atol=1e-4, rtol=1e-4), "dense path mismatch"

    # Also exercise the general (large-V) fallback path on the same data.
    vmem_limit, block_target, _ = _chip_params()
    out2 = _nconv_loop(x.reshape(N * C, V, L), A, N * C, V, L, W,
                       vmem_limit, block_target)
    out2 = jax.block_until_ready(out2).reshape(N, C, W, L)
    assert jnp.allclose(out2, ref, atol=1e-4, rtol=1e-4), "loop path mismatch"

    print("KERNEL_OK")
</pallas_src>

<mosaic_0001>
module attributes {stable_mosaic.version = 11 : i64} {
  func.func @_nconv_dense_kernel(%arg0: i32, %arg1: memref<8x256xf32, #tpu.memory_space<vmem>>, %arg2: memref<256x256xf32, #tpu.memory_space<vmem>>, %arg3: memref<8x256xf32, #tpu.memory_space<vmem>>) attributes {dimension_semantics = [#tpu.dimension_semantics<parallel>], iteration_bounds = array<i64: 1>, scalar_prefetch = 0 : i64, scratch_operands = 0 : i64, tpu.core_type = #tpu.core_type<tc>, window_params = [{transform_indices = @transform_0, window_bounds = array<i64: 8, 256>}, {pipeline_mode = #tpu.pipeline_mode<synchronous>, transform_indices = @transform_1, window_bounds = array<i64: 256, 256>}, {transform_indices = @transform_2, window_bounds = array<i64: 8, 256>}]} {
    %c0 = arith.constant 0 : index
    %c0_0 = arith.constant 0 : index
    %0 = vector.load %arg1[%c0, %c0_0] : memref<8x256xf32, #tpu.memory_space<vmem>>, vector<8x256xf32>
    %c0_1 = arith.constant 0 : index
    %c0_2 = arith.constant 0 : index
    %1 = vector.load %arg2[%c0_1, %c0_2] : memref<256x256xf32, #tpu.memory_space<vmem>>, vector<256x256xf32>
    %cst = arith.constant dense<0.000000e+00> : vector<8x256xf32>
    %2 = tpu.matmul %0, %1, %cst {dimension_numbers = #tpu.dot_dimension_numbers<[1], [0], [0], [1], [0, 0, 1, 1], [], []>} : vector<8x256xf32>, vector<256x256xf32>, vector<8x256xf32> -> vector<8x256xf32>
    %c0_3 = arith.constant 0 : index
    %c0_4 = arith.constant 0 : index
    %3 = vector.load %arg3[%c0_3, %c0_4] : memref<8x256xf32, #tpu.memory_space<vmem>>, vector<8x256xf32>
    tpu.vector_store %arg3[%c0_3, %c0_4], %2 {strides = array<i32>} : memref<8x256xf32, #tpu.memory_space<vmem>>, vector<8x256xf32>,
    return
  }
  func.func @transform_0(%arg0: i32) -> (i32, i32) {
    %c0_i32 = arith.constant 0 : i32
    %c0_i32_0 = arith.constant 0 : i32
    return %arg0, %c0_i32 : i32, i32
  }
  func.func @transform_1(%arg0: i32) -> (i32, i32) {
    %c0_i32 = arith.constant 0 : i32
    %c0_i32_0 = arith.constant 0 : i32
    %c0_i32_1 = arith.constant 0 : i32
    return %c0_i32, %c0_i32_0 : i32, i32
  }
  func.func @transform_2(%arg0: i32) -> (i32, i32) {
    %c0_i32 = arith.constant 0 : i32
    %c0_i32_0 = arith.constant 0 : i32
    return %arg0, %c0_i32 : i32, i32
  }
}

</mosaic_0001>

<llo_original>
// kernel: tpu_custom_call.1
$region0: #{tpu_custom_call.1}
  #allocation0 [shape = 'u32[]', space=smem, size = 0x4, offset = 0x4, fixed_abs, tag = 'smem constant byte address 0x4 - core index']
  #allocation1 [shape = 'u32[144,128]{1,0:T(1,128)}', space=vmem, size = 0x12000, scoped, tag = 'internal scratch']
  %s0 = inlined_call_operand.hbm [shape: f32[8,256], index: 0, kind: input, shape index: {}]
  %s1 = inlined_call_operand.hbm [shape: f32[256,256], index: 1, kind: input, shape index: {}]
  %s2 = inlined_call_operand.hbm [shape: f32[8,256], index: 2, kind: output, shape index: {}]
  %s3 = sld [smem:[#allocation0]]
  $region26: #{tpu_custom_call.1} parent=0
    _
  %s5 = ssub.s32 1, %s3
  %s6 = scalar_select 0, %s5, %s3
  $region1: #{tpu_custom_call.1} parent=0
    #allocation2 [shape = 'u8[8192]{0}', space=vmem, size = 0x2000, scoped, tag = 'input window, operand 0, single buffered']
    #allocation3 [shape = 's32[1]{0}', space=sflag, size = 0x4, scoped, tag = 'scoped memory for tpu_custom_call.1']
    #allocation4 [shape = 's32[1]{0}', space=sflag, size = 0x4, scoped, tag = 'scoped memory for tpu_custom_call.1']
    #allocation5 [shape = 'u8[262144]{0}', space=vmem, size = 0x40000, scoped, tag = 'input window, operand 1, single buffered']
    #allocation6 [shape = 's32[1]{0}', space=sflag, size = 0x4, scoped, tag = 'scoped memory for tpu_custom_call.1']
    #allocation7 [shape = 'u8[8192]{0}', space=vmem, size = 0x2000, scoped, tag = 'output window, operand 0, single buffered']
    %7 = vsyncpa [#allocation3], 0
    %8 = vsyncpa [#allocation6], 0
    %9 = vsyncpa [#allocation4], 0
    // Predicated region
    $region2: #{tpu_custom_call.1} parent=1 // pred_check
      _
    $region3: #{tpu_custom_call.1} parent=1 // pred_check_branch
      %11 = sbr.rel (0) target = $region5
    $region4: #{tpu_custom_call.1} parent=1 // pred_region
      %s13 = ssub.s32 256, 256
      %14 = vsyncadd [#allocation3], %s13
      %s16 = sshll.u32 [#allocation2], 4
      %s17 = int_to_ptr.vmem [resolvable:$true] %s16
      %19 = dma.hbm_to_vmem [thread:$0]  %s0, 256, %s17, [#allocation3]
    $region5: #{tpu_custom_call.1} parent=1 // pred_fallthru
      _
    // Predicated region
    $region6: #{tpu_custom_call.1} parent=1 // pred_check
      _
    $region7: #{tpu_custom_call.1} parent=1 // pred_check_branch
      %21 = sbr.rel (0) target = $region9
    $region8: #{tpu_custom_call.1} parent=1 // pred_region
      %s23 = ssub.s32 8192, 8192
      %24 = vsyncadd [#allocation6], %s23
      %s25 = sshll.u32 [#allocation5], 4
      %s26 = int_to_ptr.vmem [resolvable:$true] %s25
      %31 = dma.hbm_to_vmem [thread:$0]  %s1, 8192, %s26, [#allocation6], 256, 256, 16
    $region9: #{tpu_custom_call.1} parent=1 // pred_fallthru
      _
    // Predicated region
    $region10: #{tpu_custom_call.1} parent=1 // pred_check
      _
    $region11: #{tpu_custom_call.1} parent=1 // pred_check_branch
      %33 = sbr.rel (0) target = $region13
    $region12: #{tpu_custom_call.1} parent=1 // pred_region
      %34 = dma.done [#allocation3], 256
    $region13: #{tpu_custom_call.1} parent=1 // pred_fallthru
      _
    // Predicated region
    $region14: #{tpu_custom_call.1} parent=1 // pred_check
      _
    $region15: #{tpu_custom_call.1} parent=1 // pred_check_branch
      %36 = sbr.rel (0) target = $region17
    $region16: #{tpu_custom_call.1} parent=1 // pred_region
      %37 = dma.done [#allocation6], 8192
    $region17: #{tpu_custom_call.1} parent=1 // pred_fallthru
      _
    %v38 = vld [vmem:[#allocation2] sm:$0xff]
    %v39 = vld [vmem:[#allocation2 + $0x8] sm:$0xff]
    %v40 = vld [vmem:[#allocation5] sm:$0xff]
    %v41 = vld [vmem:[#allocation5 + $0x8] sm:$0xff]
    %v42 = vld [vmem:[#allocation5 + $0x10] sm:$0xff]
    %v43 = vld [vmem:[#allocation5 + $0x18] sm:$0xff]
    %v44 = vld [vmem:[#allocation5 + $0x20] sm:$0xff]
    %v45 = vld [vmem:[#allocation5 + $0x28] sm:$0xff]
    %v46 = vld [vmem:[#allocation5 + $0x30] sm:$0xff]
    %v47 = vld [vmem:[#allocation5 + $0x38] sm:$0xff]
    %v48 = vld [vmem:[#allocation5 + $0x40] sm:$0xff]
    %v49 = vld [vmem:[#allocation5 + $0x48] sm:$0xff]
    %v50 = vld [vmem:[#allocation5 + $0x50] sm:$0xff]
    %v51 = vld [vmem:[#allocation5 + $0x58] sm:$0xff]
    %v52 = vld [vmem:[#allocation5 + $0x60] sm:$0xff]
    %v53 = vld [vmem:[#allocation5 + $0x68] sm:$0xff]
    %v54 = vld [vmem:[#allocation5 + $0x70] sm:$0xff]
    %v55 = vld [vmem:[#allocation5 + $0x78] sm:$0xff]
    %v56 = vld [vmem:[#allocation5 + $0x80] sm:$0xff]
    %v57 = vld [vmem:[#allocation5 + $0x88] sm:$0xff]
    %v58 = vld [vmem:[#allocation5 + $0x90] sm:$0xff]
    %v59 = vld [vmem:[#allocation5 + $0x98] sm:$0xff]
    %v60 = vld [vmem:[#allocation5 + $0xa0] sm:$0xff]
    %v61 = vld [vmem:[#allocation5 + $0xa8] sm:$0xff]
    %v62 = vld [vmem:[#allocation5 + $0xb0] sm:$0xff]
    %v63 = vld [vmem:[#allocation5 + $0xb8] sm:$0xff]
    %v64 = vld [vmem:[#allocation5 + $0xc0] sm:$0xff]
    %v65 = vld [vmem:[#allocation5 + $0xc8] sm:$0xff]
    %v66 = vld [vmem:[#allocation5 + $0xd0] sm:$0xff]
    %v67 = vld [vmem:[#allocation5 + $0xd8] sm:$0xff]
    %v68 = vld [vmem:[#allocation5 + $0xe0] sm:$0xff]
    %v69 = vld [vmem:[#allocation5 + $0xe8] sm:$0xff]
    %v70 = vld [vmem:[#allocation5 + $0xf0] sm:$0xff]
    %v71 = vld [vmem:[#allocation5 + $0xf8] sm:$0xff]
    %v72 = vld [vmem:[#allocation5 + $0x100] sm:$0xff]
    %v73 = vld [vmem:[#allocation5 + $0x108] sm:$0xff]
    %v74 = vld [vmem:[#allocation5 + $0x110] sm:$0xff]
    %v75 = vld [vmem:[#allocation5 + $0x118] sm:$0xff]
    %v76 = vld [vmem:[#allocation5 + $0x120] sm:$0xff]
    %v77 = vld [vmem:[#allocation5 + $0x128] sm:$0xff]
    %v78 = vld [vmem:[#allocation5 + $0x130] sm:$0xff]
    %v79 = vld [vmem:[#allocation5 + $0x138] sm:$0xff]
    %v80 = vld [vmem:[#allocation5 + $0x140] sm:$0xff]
    %v81 = vld [vmem:[#allocation5 + $0x148] sm:$0xff]
    %v82 = vld [vmem:[#allocation5 + $0x150] sm:$0xff]
    %v83 = vld [vmem:[#allocation5 + $0x158] sm:$0xff]
    %v84 = vld [vmem:[#allocation5 + $0x160] sm:$0xff]
    %v85 = vld [vmem:[#allocation5 + $0x168] sm:$0xff]
    %v86 = vld [vmem:[#allocation5 + $0x170] sm:$0xff]
    %v87 = vld [vmem:[#allocation5 + $0x178] sm:$0xff]
    %v88 = vld [vmem:[#allocation5 + $0x180] sm:$0xff]
    %v89 = vld [vmem:[#allocation5 + $0x188] sm:$0xff]
    %v90 = vld [vmem:[#allocation5 + $0x190] sm:$0xff]
    %v91 = vld [vmem:[#allocation5 + $0x198] sm:$0xff]
    %v92 = vld [vmem:[#allocation5 + $0x1a0] sm:$0xff]
    %v93 = vld [vmem:[#allocation5 + $0x1a8] sm:$0xff]
    %v94 = vld [vmem:[#allocation5 + $0x1b0] sm:$0xff]
    %v95 = vld [vmem:[#allocation5 + $0x1b8] sm:$0xff]
    %v96 = vld [vmem:[#allocation5 + $0x1c0] sm:$0xff]
    %v97 = vld [vmem:[#allocation5 + $0x1c8] sm:$0xff]
    %v98 = vld [vmem:[#allocation5 + $0x1d0] sm:$0xff]
    %v99 = vld [vmem:[#allocation5 + $0x1d8] sm:$0xff]
    %v100 = vld [vmem:[#allocation5 + $0x1e0] sm:$0xff]
    %v101 = vld [vmem:[#allocation5 + $0x1e8] sm:$0xff]
    %v102 = vld [vmem:[#allocation5 + $0x1f0] sm:$0xff]
    %v103 = vld [vmem:[#allocation5 + $0x1f8] sm:$0xff]
    %104 = vmatprep.subr.mxu0 %v41
    %105 = vmatpush1.msra.mxu0 %v40
    %106 = vmatprep.subr.mxu0 %v43
    %107 = vmatpush1.msra.mxu0 %v42
    %108 = vmatprep.subr.mxu0 %v45
    %109 = vmatpush1.msra.mxu0 %v44
    %110 = vmatprep.subr.mxu0 %v47
    %111 = vmatpush1.msra.mxu0 %v46
    %112 = vmatprep.subr.mxu0 %v49
    %113 = vmatpush1.msra.mxu0 %v48
    %114 = vmatprep.subr.mxu0 %v51
    %115 = vmatpush1.msra.mxu0 %v50
    %116 = vmatprep.subr.mxu0 %v53
    %117 = vmatpush1.msra.mxu0 %v52
    %118 = vmatprep.subr.mxu0 %v55
    %119 = vmatpush1.msra.mxu0 %v54
    %120 = vmatprep.subr.mxu0 %v57
    %121 = vmatpush1.msra.mxu0 %v56
    %122 = vmatprep.subr.mxu0 %v59
    %123 = vmatpush1.msra.mxu0 %v58
    %124 = vmatprep.subr.mxu0 %v61
    %125 = vmatpush1.msra.mxu0 %v60
    %126 = vmatprep.subr.mxu0 %v63
    %127 = vmatpush1.msra.mxu0 %v62
    %128 = vmatprep.subr.mxu0 %v65
    %129 = vmatpush1.msra.mxu0 %v64
    %130 = vmatprep.subr.mxu0 %v67
    %131 = vmatpush1.msra.mxu0 %v66
    %132 = vmatprep.subr.mxu0 %v69
    %133 = vmatpush1.msra.mxu0 %v68
    %134 = vmatprep.subr.mxu0 %v71
    %135 = vmatpush1.msra.mxu0 %v70
    %136 = vmatprep.subr.mxu0 %v73
    %137 = vmatpush1.msra.mxu0 %v72
    %138 = vmatprep.subr.mxu0 %v75
    %139 = vmatpush1.msra.mxu0 %v74
    %140 = vmatprep.subr.mxu0 %v77
    %141 = vmatpush1.msra.mxu0 %v76
    %142 = vmatprep.subr.mxu0 %v79
    %143 = vmatpush1.msra.mxu0 %v78
    %144 = vmatprep.subr.mxu0 %v81
    %145 = vmatpush1.msra.mxu0 %v80
    %146 = vmatprep.subr.mxu0 %v83
    %147 = vmatpush1.msra.mxu0 %v82
    %148 = vmatprep.subr.mxu0 %v85
    %149 = vmatpush1.msra.mxu0 %v84
    %150 = vmatprep.subr.mxu0 %v87
    %151 = vmatpush1.msra.mxu0 %v86
    %152 = vmatprep.subr.mxu0 %v89
    %153 = vmatpush1.msra.mxu0 %v88
    %154 = vmatprep.subr.mxu0 %v91
    %155 = vmatpush1.msra.mxu0 %v90
    %156 = vmatprep.subr.mxu0 %v93
    %157 = vmatpush1.msra.mxu0 %v92
    %158 = vmatprep.subr.mxu0 %v95
    %159 = vmatpush1.msra.mxu0 %v94
    %160 = vmatprep.subr.mxu0 %v97
    %161 = vmatpush1.msra.mxu0 %v96
    %162 = vmatprep.subr.mxu0 %v99
    %163 = vmatpush1.msra.mxu0 %v98
    %164 = vmatprep.subr.mxu0 %v101
    %165 = vmatpush1.msra.mxu0 %v100
    %166 = vmatprep.subr.mxu0 %v103
    %167 = vmatpush1.msra.mxu0 %v102
    %168 = vmatprep.mubr.f32.mxu0 %v39
    %169 = vmatmul.mubr.f32.gmra.mrb[0].mxu0 %v38
    %v170 = vpop.f32.mrb[0].mxu0
    %v171 = vadd.f32 0.0, %v170
    %v172 = vpop.f32.mrb[0].mxu0
    %v173 = vadd.f32 0.0, %v172
    %174 = vdwg.mxu0
    %175 = vst [vmem:[#allocation7] sm:$0xff] %v171
    %176 = vst [vmem:[#allocation7 + $0x8] sm:$0xff] %v173
    // Predicated region
    $region18: #{tpu_custom_call.1} parent=1 // pred_check
      _
    $region19: #{tpu_custom_call.1} parent=1 // pred_check_branch
      %178 = sbr.rel (0) target = $region21
    $region20: #{tpu_custom_call.1} parent=1 // pred_region
      %s180 = ssub.s32 256, 256
      %181 = vsyncadd [#allocation4], %s180
      %s183 = sshll.u32 [#allocation7], 4
      %s184 = int_to_ptr.vmem [resolvable:$true] %s183
      %186 = dma.vmem_to_hbm [thread:$0]  %s184, 256, %s2, [#allocation4]
    $region21: #{tpu_custom_call.1} parent=1 // pred_fallthru
      _
    // Predicated region
    $region22: #{tpu_custom_call.1} parent=1 // pred_check
      _
    $region23: #{tpu_custom_call.1} parent=1 // pred_check_branch
      %188 = sbr.rel (0) target = $region25
    $region24: #{tpu_custom_call.1} parent=1 // pred_region
      %189 = dma.done [#allocation4], 256
    $region25: #{tpu_custom_call.1} parent=1 // pred_fallthru
      _
    %190 = vsyncpa [#allocation3], 1
    %191 = vsyncpa [#allocation6], 1
    %192 = vsyncpa [#allocation4], 1

</llo_original>
